<compile_context>
chip_gen: v5e
topology: v5e:2x2
jax: 0.10.0
libtpu: 0.0.40
codegen_flags: <defaults>
</compile_context>

<pallas_src>
import functools

import jax
import jax.numpy as jnp
from jax import lax
from jax.experimental import pallas as pl
from jax.experimental.pallas import tpu as pltpu


def _round_up(x, m):
    return ((x + m - 1) // m) * m


def _standout_kernel(prev_ref, pi_ref, cur_ref, *rest,
                     alpha, beta, mode, tm, tn):
    # mode: "det"     -> rest = (out_ref, p_ref)
    #       "prng"    -> rest = (seed_ref, out_ref, p_ref)   (on-chip PRNG)
    #       "uniform" -> rest = (unif_ref, out_ref, p_ref)   (interpret/CPU fallback)
    if mode == "det":
        out_ref, p_ref = rest
        rand_ref = None
    else:
        rand_ref, out_ref, p_ref = rest

    # Bind grid queries ONCE at the top level (never inside pl.when bodies) and
    # close over the resulting scalars below.
    i = pl.program_id(0)
    j = pl.program_id(1)
    k = pl.program_id(2)
    nk = pl.num_programs(2)

    @pl.when(k == 0)
    def _init():
        p_ref[...] = jnp.zeros_like(p_ref)

    # (tm, tk) x (tn, tk), contracted on K -> (tm, tn), accumulated in f32 directly
    # into the resident p output tile (its block index is constant across k).
    p_ref[...] += lax.dot_general(
        prev_ref[...], pi_ref[...],
        dimension_numbers=(((1,), (1,)), ((), ())),
        preferred_element_type=jnp.float32)

    @pl.when(k == nk - 1)
    def _finalize():
        p = jnp.maximum(alpha * p_ref[...] + beta, 0.0)   # ReLU(alpha*x + beta)
        p_ref[...] = p
        cur = cur_ref[...].astype(jnp.float32)

        if mode == "det":
            out_ref[...] = p * cur
        else:
            if mode == "prng":
                # Per-tile seeding keeps tiles decorrelated; seed comes from SMEM.
                pltpu.prng_seed(rand_ref[0], i, j)
                bits = pltpu.prng_random_bits((tm, tn))
                if bits.dtype != jnp.dtype(jnp.uint32):
                    bits = pltpu.bitcast(bits, jnp.uint32)
                # 23 random mantissa bits -> float in [1, 2), shift to [0, 1).
                u = pltpu.bitcast((bits >> 9) | jnp.uint32(0x3F800000),
                                  jnp.float32) - jnp.float32(1.0)
            else:
                u = rand_ref[...]
            mask = (u < p).astype(jnp.float32)
            out_ref[...] = mask * cur


def standout_forward(previous, current, pi, *, alpha, beta, seed=None,
                     deterministic=False, tm=256, tn=512, tk=512,
                     matmul_dtype=jnp.bfloat16, use_onchip_prng=None):
    """JAX/Pallas equivalent of Standout.forward(previous, current).

    Returns (out, p).  `deterministic` must be a Python bool (trace-time
    specialization).  When deterministic=False a per-step `seed` is required —
    reusing a seed replays the identical dropout mask.  `matmul_dtype=jnp.float32`
    is available if bf16 p-values near the dropout threshold are a concern.
    """
    B, K = previous.shape
    N, K2 = pi.shape
    assert K2 == K, (pi.shape, previous.shape)
    assert current.shape == (B, N), (current.shape, (B, N))

    if use_onchip_prng is None:
        use_onchip_prng = jax.default_backend() == "tpu"

    if deterministic:
        mode = "det"
    elif use_onchip_prng:
        mode = "prng"
    else:
        mode = "uniform"

    if mode != "det" and seed is None:
        raise ValueError("pass a per-step `seed` when deterministic=False "
                         "(a fixed seed replays the same dropout mask).")

    # --- Tile selection -----------------------------------------------------
    # HBM matmul traffic ~ B*K*gj (previous) + N*K*gi (pi): large batches prefer a
    # taller tm (fewer pi re-streams); small batches keep tm clamped and spend
    # VMEM on tn/tk instead.
    if B >= 1024:
        tm = max(tm, 512)
    tm = min(tm, _round_up(B, 16))     # bf16 sublane-friendly
    tn = min(tn, _round_up(N, 128))    # lane-dense stores
    tk = min(tk, _round_up(K, 128))

    Bp, Np, Kp = _round_up(B, tm), _round_up(N, tn), _round_up(K, tk)
    # Keep at least two (i, j) output tiles when possible so both TensorCores get
    # work on v7x under ("parallel", "parallel", "arbitrary").
    if Bp == tm and Np == tn and tn % 256 == 0:
        tn //= 2
    gi, gj, gk = Bp // tm, Np // tn, Kp // tk

    # --- Padding (skipped entirely when already aligned) ---------------------
    def _pad2(x, rows, cols):
        if rows == 0 and cols == 0:
            return x
        return jnp.pad(x, ((0, rows), (0, cols)))

    prev_p = _pad2(previous.astype(matmul_dtype), Bp - B, Kp - K)
    pi_p = _pad2(pi.astype(matmul_dtype), Np - N, Kp - K)
    cur_p = _pad2(current, Bp - B, Np - N)   # original dtype; upcast in-kernel

    # --- Specs / inputs -------------------------------------------------------
    in_specs = [
        pl.BlockSpec((tm, tk), lambda i, j, k: (i, k)),   # previous (B, K)
        pl.BlockSpec((tn, tk), lambda i, j, k: (j, k)),   # pi       (N, K)
        pl.BlockSpec((tm, tn), lambda i, j, k: (i, j)),   # current  (B, N)
    ]
    inputs = [prev_p, pi_p, cur_p]
    if mode == "prng":
        in_specs.append(pl.BlockSpec(memory_space=pltpu.SMEM))
        inputs.append(jnp.asarray([seed], dtype=jnp.int32))
    elif mode == "uniform":
        # Interpret/CPU fallback only: pltpu PRNG has no interpret lowering.
        unif = jax.random.uniform(jax.random.PRNGKey(seed), (Bp, Np),
                                  dtype=jnp.float32)
        in_specs.append(pl.BlockSpec((tm, tn), lambda i, j, k: (i, j)))
        inputs.append(unif)

    out_specs = (
        pl.BlockSpec((tm, tn), lambda i, j, k: (i, j)),   # out
        pl.BlockSpec((tm, tn), lambda i, j, k: (i, j)),   # p (doubles as accumulator)
    )
    out_shape = (
        jax.ShapeDtypeStruct((Bp, Np), jnp.float32),
        jax.ShapeDtypeStruct((Bp, Np), jnp.float32),
    )

    # Double-buffered VMEM footprint estimate -> scoped-VMEM limit with headroom
    # (>= 32 MiB so defaults are untouched on v6e/v7x, raised for large tiles on
    # v5e's 16 MiB default, capped at 64 MiB for v7x physical VMEM).
    mm_b = jnp.dtype(matmul_dtype).itemsize
    cur_b = jnp.dtype(cur_p.dtype).itemsize
    unif_b = 4 if mode == "uniform" else 0
    est = 2 * (tm * tk * mm_b + tn * tk * mm_b
               + tm * tn * (cur_b + unif_b) + 2 * tm * tn * 4)
    compiler_params = pltpu.CompilerParams(
        dimension_semantics=("parallel", "parallel", "arbitrary"),
        vmem_limit_bytes=int(min(max(2 * est, 32 << 20), 64 << 20)))

    kernel = functools.partial(_standout_kernel, alpha=float(alpha),
                               beta=float(beta), mode=mode, tm=tm, tn=tn)

    out_pad, p_pad = pl.pallas_call(
        kernel,
        grid=(gi, gj, gk),
        in_specs=in_specs,
        out_specs=out_specs,
        out_shape=out_shape,
        compiler_params=compiler_params,
    )(*inputs)

    return out_pad[:B, :N], p_pad[:B, :N]


if __name__ == "__main__":
    key = jax.random.PRNGKey(0)
    k_prev, k_cur, k_pi = jax.random.split(key, 3)

    B, K, N = 8, 32, 32          # batch, in_features, out_features (hidden)
    alpha, beta = 1.0, -0.5

    previous = jax.random.normal(k_prev, (B, K), dtype=jnp.float32)
    current = jax.random.normal(k_cur, (B, N), dtype=jnp.float32)
    # Deterministic "last_layer.weight" init (Linear(K -> N) weight: (N, K)).
    pi = jax.random.normal(k_pi, (N, K), dtype=jnp.float32) * 0.1

    out, p = standout_forward(previous, current, pi,
                              alpha=alpha, beta=beta, seed=0,
                              deterministic=False)
    jax.block_until_ready(out)

    out_det, p_det = standout_forward(previous, current, pi,
                                      alpha=alpha, beta=beta,
                                      deterministic=True)
    jax.block_until_ready(out_det)

    # Sanity checks against a plain-JAX reference (same bf16-matmul precision).
    p_ref = jnp.maximum(
        alpha * jnp.dot(previous.astype(jnp.bfloat16),
                        pi.astype(jnp.bfloat16).T,
                        preferred_element_type=jnp.float32) + beta, 0.0)
    assert out.shape == (B, N) and p.shape == (B, N)
    assert bool(jnp.all(p >= 0.0))                                  # ReLU output
    assert bool(jnp.allclose(p, p_ref, atol=1e-2, rtol=1e-2))       # matmul path
    assert bool(jnp.allclose(p_det, p, atol=1e-6))                  # same p both modes
    assert bool(jnp.allclose(out_det, p_det * current, atol=1e-6))  # det. branch
    # Stochastic branch: every element is either dropped (0) or passes current.
    assert bool(jnp.all((out == 0.0) | jnp.isclose(out, current, atol=1e-6)))

    print("KERNEL_OK")
</pallas_src>

<mosaic_0001>
module attributes {stable_mosaic.version = 11 : i64} {
  func.func @_standout_kernel(%arg0: i32, %arg1: i32, %arg2: i32, %arg3: memref<16x128xbf16, #tpu.memory_space<vmem>>, %arg4: memref<128x128xbf16, #tpu.memory_space<vmem>>, %arg5: memref<16x128xf32, #tpu.memory_space<vmem>>, %arg6: memref<16x128xf32, #tpu.memory_space<vmem>>, %arg7: memref<16x128xf32, #tpu.memory_space<vmem>>, %arg8: memref<16x128xf32, #tpu.memory_space<vmem>>) attributes {dimension_semantics = [#tpu.dimension_semantics<parallel>, #tpu.dimension_semantics<parallel>, #tpu.dimension_semantics<arbitrary>], iteration_bounds = array<i64: 1, 1, 1>, scalar_prefetch = 0 : i64, scratch_operands = 0 : i64, tpu.core_type = #tpu.core_type<tc>, window_params = [{transform_indices = @transform_0, window_bounds = array<i64: 16, 128>}, {transform_indices = @transform_1, window_bounds = array<i64: 128, 128>}, {transform_indices = @transform_2, window_bounds = array<i64: 16, 128>}, {transform_indices = @transform_3, window_bounds = array<i64: 16, 128>}, {transform_indices = @transform_4, window_bounds = array<i64: 16, 128>}, {transform_indices = @transform_5, window_bounds = array<i64: 16, 128>}]} {
    %c0_i32 = arith.constant 0 : i32
    %0 = arith.cmpi eq, %arg2, %c0_i32 : i32
    %1 = arith.extui %0 : i1 to i32
    %c0_i32_0 = arith.constant 0 : i32
    %2 = arith.cmpi ne, %1, %c0_i32_0 : i32
    scf.if %2 {
      %cst_10 = arith.constant 0.000000e+00 : f32
      %12 = vector.broadcast %cst_10 : f32 to vector<16x128xf32>
      %c0_11 = arith.constant 0 : index
      %c0_12 = arith.constant 0 : index
      %13 = vector.load %arg8[%c0_11, %c0_12] : memref<16x128xf32, #tpu.memory_space<vmem>>, vector<16x128xf32>
      tpu.vector_store %arg8[%c0_11, %c0_12], %12 {strides = array<i32>} : memref<16x128xf32, #tpu.memory_space<vmem>>, vector<16x128xf32>,
    } else {
    }
    %c0 = arith.constant 0 : index
    %c0_1 = arith.constant 0 : index
    %3 = vector.load %arg8[%c0, %c0_1] : memref<16x128xf32, #tpu.memory_space<vmem>>, vector<16x128xf32>
    %c0_2 = arith.constant 0 : index
    %c0_3 = arith.constant 0 : index
    %4 = vector.load %arg3[%c0_2, %c0_3] : memref<16x128xbf16, #tpu.memory_space<vmem>>, vector<16x128xbf16>
    %c0_4 = arith.constant 0 : index
    %c0_5 = arith.constant 0 : index
    %5 = vector.load %arg4[%c0_4, %c0_5] : memref<128x128xbf16, #tpu.memory_space<vmem>>, vector<128x128xbf16>
    %cst = arith.constant dense<0.000000e+00> : vector<16x128xf32>
    %6 = tpu.matmul %4, %5, %cst {dimension_numbers = #tpu.dot_dimension_numbers<[1], [1], [0], [0], [0, 0, 1, 0], [], []>} : vector<16x128xbf16>, vector<128x128xbf16>, vector<16x128xf32> -> vector<16x128xf32>
    %7 = arith.addf %3, %6 : vector<16x128xf32>
    %c0_6 = arith.constant 0 : index
    %c0_7 = arith.constant 0 : index
    %8 = vector.load %arg8[%c0_6, %c0_7] : memref<16x128xf32, #tpu.memory_space<vmem>>, vector<16x128xf32>
    tpu.vector_store %arg8[%c0_6, %c0_7], %7 {strides = array<i32>} : memref<16x128xf32, #tpu.memory_space<vmem>>, vector<16x128xf32>,
    %c0_i32_8 = arith.constant 0 : i32
    %9 = arith.cmpi eq, %arg2, %c0_i32_8 : i32
    %10 = arith.extui %9 : i1 to i32
    %c0_i32_9 = arith.constant 0 : i32
    %11 = arith.cmpi ne, %10, %c0_i32_9 : i32
    scf.if %11 {
      %c0_10 = arith.constant 0 : index
      %c0_11 = arith.constant 0 : index
      %12 = vector.load %arg8[%c0_10, %c0_11] : memref<16x128xf32, #tpu.memory_space<vmem>>, vector<16x128xf32>
      %cst_12 = arith.constant 1.000000e+00 : f32
      %13 = vector.broadcast %cst_12 : f32 to vector<16x128xf32>
      %14 = arith.mulf %13, %12 : vector<16x128xf32>
      %cst_13 = arith.constant -5.000000e-01 : f32
      %15 = vector.broadcast %cst_13 : f32 to vector<16x128xf32>
      %16 = arith.addf %14, %15 : vector<16x128xf32>
      %cst_14 = arith.constant 0.000000e+00 : f32
      %17 = vector.broadcast %cst_14 : f32 to vector<16x128xf32>
      %18 = arith.maximumf %16, %17 : vector<16x128xf32>
      %c0_15 = arith.constant 0 : index
      %c0_16 = arith.constant 0 : index
      %19 = vector.load %arg8[%c0_15, %c0_16] : memref<16x128xf32, #tpu.memory_space<vmem>>, vector<16x128xf32>
      tpu.vector_store %arg8[%c0_15, %c0_16], %18 {strides = array<i32>} : memref<16x128xf32, #tpu.memory_space<vmem>>, vector<16x128xf32>,
      %c0_17 = arith.constant 0 : index
      %c0_18 = arith.constant 0 : index
      %20 = vector.load %arg5[%c0_17, %c0_18] : memref<16x128xf32, #tpu.memory_space<vmem>>, vector<16x128xf32>
      %c0_19 = arith.constant 0 : index
      %c0_20 = arith.constant 0 : index
      %21 = vector.load %arg6[%c0_19, %c0_20] : memref<16x128xf32, #tpu.memory_space<vmem>>, vector<16x128xf32>
      %22 = arith.cmpf olt, %21, %18 : vector<16x128xf32>
      %23 = arith.extui %22 : vector<16x128xi1> to vector<16x128xi32>
      %24 = arith.sitofp %23 : vector<16x128xi32> to vector<16x128xf32>
      %25 = arith.mulf %24, %20 : vector<16x128xf32>
      %c0_21 = arith.constant 0 : index
      %c0_22 = arith.constant 0 : index
      %26 = vector.load %arg7[%c0_21, %c0_22] : memref<16x128xf32, #tpu.memory_space<vmem>>, vector<16x128xf32>
      tpu.vector_store %arg7[%c0_21, %c0_22], %25 {strides = array<i32>} : memref<16x128xf32, #tpu.memory_space<vmem>>, vector<16x128xf32>,
    } else {
    }
    return
  }
  func.func @transform_0(%arg0: i32, %arg1: i32, %arg2: i32) -> (i32, i32) {
    %c0_i32 = arith.constant 0 : i32
    return %arg0, %arg2 : i32, i32
  }
  func.func @transform_1(%arg0: i32, %arg1: i32, %arg2: i32) -> (i32, i32) {
    %c0_i32 = arith.constant 0 : i32
    return %arg1, %arg2 : i32, i32
  }
  func.func @transform_2(%arg0: i32, %arg1: i32, %arg2: i32) -> (i32, i32) {
    %c0_i32 = arith.constant 0 : i32
    return %arg0, %arg1 : i32, i32
  }
  func.func @transform_3(%arg0: i32, %arg1: i32, %arg2: i32) -> (i32, i32) {
    %c0_i32 = arith.constant 0 : i32
    return %arg0, %arg1 : i32, i32
  }
  func.func @transform_4(%arg0: i32, %arg1: i32, %arg2: i32) -> (i32, i32) {
    %c0_i32 = arith.constant 0 : i32
    return %arg0, %arg1 : i32, i32
  }
  func.func @transform_5(%arg0: i32, %arg1: i32, %arg2: i32) -> (i32, i32) {
    %c0_i32 = arith.constant 0 : i32
    return %arg0, %arg1 : i32, i32
  }
}

</mosaic_0001>

<llo_original>
// kernel: tpu_custom_call.1
$region0: #{tpu_custom_call.1}
  #allocation0 [shape = 'u32[]', space=smem, size = 0x4, offset = 0x4, fixed_abs, tag = 'smem constant byte address 0x4 - core index']
  #allocation1 [shape = 'u32[72,128]{1,0:T(1,128)}', space=vmem, size = 0x9000, scoped, tag = 'internal scratch']
  %s0 = inlined_call_operand.hbm [shape: bf16[16,128], index: 0, kind: input, shape index: {}]
  %s1 = inlined_call_operand.hbm [shape: bf16[128,128], index: 1, kind: input, shape index: {}]
  %s2 = inlined_call_operand.hbm [shape: f32[16,128], index: 2, kind: input, shape index: {}]
  %s3 = inlined_call_operand.hbm [shape: f32[16,128], index: 3, kind: input, shape index: {}]
  %s4 = inlined_call_operand.hbm [shape: f32[16,128], index: 4, kind: output, shape index: {0}]
  %s5 = inlined_call_operand.hbm [shape: f32[16,128], index: 5, kind: output, shape index: {1}]
  %6 = xla_tuple %s4, %s5
  %s7 = sld [smem:[#allocation0]]
  $region58: #{tpu_custom_call.1} parent=0
    _
  %s9 = ssub.s32 1, %s7
  %s10 = scalar_select 0, %s9, %s7
  $region1: #{tpu_custom_call.1} parent=0
    #allocation2 [shape = 'u8[4096]{0}', space=vmem, size = 0x1000, scoped, tag = 'input window, operand 0, single buffered']
    #allocation3 [shape = 's32[1]{0}', space=sflag, size = 0x4, scoped, tag = 'scoped memory for tpu_custom_call.1']
    #allocation4 [shape = 's32[1]{0}', space=sflag, size = 0x4, scoped, tag = 'scoped memory for tpu_custom_call.1']
    #allocation5 [shape = 'u8[32768]{0}', space=vmem, size = 0x8000, scoped, tag = 'input window, operand 1, single buffered']
    #allocation6 [shape = 's32[1]{0}', space=sflag, size = 0x4, scoped, tag = 'scoped memory for tpu_custom_call.1']
    #allocation7 [shape = 'u8[8192]{0}', space=vmem, size = 0x2000, scoped, tag = 'input window, operand 2, single buffered']
    #allocation8 [shape = 'u8[8192]{0}', space=vmem, size = 0x2000, scoped, tag = 'input window, operand 3, single buffered']
    #allocation9 [shape = 's32[1]{0}', space=sflag, size = 0x4, scoped, tag = 'scoped memory for tpu_custom_call.1']
    #allocation10 [shape = 'u8[8192]{0}', space=vmem, size = 0x2000, scoped, tag = 'output window, operand 0, single buffered']
    #allocation11 [shape = 'u8[8192]{0}', space=vmem, size = 0x2000, scoped, tag = 'output window, operand 1, single buffered']
    #allocation12 [shape = 's32[1]{0}', space=sflag, size = 0x4, scoped, tag = 'scoped memory for tpu_custom_call.1']
    %11 = vsyncpa [#allocation3], 0
    %12 = vsyncpa [#allocation6], 0
    %13 = vsyncpa [#allocation9], 0
    %14 = vsyncpa [#allocation4], 0
    %15 = vsyncpa [#allocation12], 0
    // Predicated region
    $region2: #{tpu_custom_call.1} parent=1 // pred_check
      _
    $region3: #{tpu_custom_call.1} parent=1 // pred_check_branch
      %17 = sbr.rel (0) target = $region5
    $region4: #{tpu_custom_call.1} parent=1 // pred_region
      %19 = vsyncadd [#allocation3], 0
      %s20 = sshll.u32 %s0, 4
      %s21 = int_to_ptr.hbm [resolvable:$true] %s20
      %s22 = sshll.u32 [#allocation2], 4
      %s23 = int_to_ptr.vmem [resolvable:$true] %s22
      %28 = dma.hbm_to_vmem [thread:$0]  %s21, 128, %s23, [#allocation3], 64, 64, 4
    $region5: #{tpu_custom_call.1} parent=1 // pred_fallthru
      _
    // Predicated region
    $region6: #{tpu_custom_call.1} parent=1 // pred_check
      _
    $region7: #{tpu_custom_call.1} parent=1 // pred_check_branch
      %30 = sbr.rel (0) target = $region9
    $region8: #{tpu_custom_call.1} parent=1 // pred_region
      %32 = vsyncadd [#allocation6], 0
      %s33 = sshll.u32 %s1, 4
      %s34 = int_to_ptr.hbm [resolvable:$true] %s33
      %s35 = sshll.u32 [#allocation5], 4
      %s36 = int_to_ptr.vmem [resolvable:$true] %s35
      %41 = dma.hbm_to_vmem [thread:$0]  %s34, 1024, %s36, [#allocation6], 64, 64, 4
    $region9: #{tpu_custom_call.1} parent=1 // pred_fallthru
      _
    // Predicated region
    $region10: #{tpu_custom_call.1} parent=1 // pred_check
      _
    $region11: #{tpu_custom_call.1} parent=1 // pred_check_branch
      %43 = sbr.rel (0) target = $region13
    $region12: #{tpu_custom_call.1} parent=1 // pred_region
      %45 = vsyncadd [#allocation6], 0
      %s46 = sshll.u32 %s2, 4
      %s47 = int_to_ptr.hbm [resolvable:$true] %s46
      %s48 = sshll.u32 [#allocation7], 4
      %s49 = int_to_ptr.vmem [resolvable:$true] %s48
      %54 = dma.hbm_to_vmem [thread:$0]  %s47, 256, %s49, [#allocation6], 128, 128, 8
    $region13: #{tpu_custom_call.1} parent=1 // pred_fallthru
      _
    // Predicated region
    $region14: #{tpu_custom_call.1} parent=1 // pred_check
      _
    $region15: #{tpu_custom_call.1} parent=1 // pred_check_branch
      %56 = sbr.rel (0) target = $region17
    $region16: #{tpu_custom_call.1} parent=1 // pred_region
      %58 = vsyncadd [#allocation9], 0
      %s59 = sshll.u32 %s3, 4
      %s60 = int_to_ptr.hbm [resolvable:$true] %s59
      %s61 = sshll.u32 [#allocation8], 4
      %s62 = int_to_ptr.vmem [resolvable:$true] %s61
      %67 = dma.hbm_to_vmem [thread:$0]  %s60, 256, %s62, [#allocation9], 128, 128, 8
    $region17: #{tpu_custom_call.1} parent=1 // pred_fallthru
      _
    // Predicated region
    $region18: #{tpu_custom_call.1} parent=1 // pred_check
      _
    $region19: #{tpu_custom_call.1} parent=1 // pred_check_branch
      %69 = sbr.rel (0) target = $region21
    $region20: #{tpu_custom_call.1} parent=1 // pred_region
      %71 = dma.done [#allocation3], 128
    $region21: #{tpu_custom_call.1} parent=1 // pred_fallthru
      _
    // Predicated region
    $region22: #{tpu_custom_call.1} parent=1 // pred_check
      _
    $region23: #{tpu_custom_call.1} parent=1 // pred_check_branch
      %73 = sbr.rel (0) target = $region25
    $region24: #{tpu_custom_call.1} parent=1 // pred_region
      %75 = dma.done [#allocation6], 1024
    $region25: #{tpu_custom_call.1} parent=1 // pred_fallthru
      _
    // Predicated region
    $region26: #{tpu_custom_call.1} parent=1 // pred_check
      _
    $region27: #{tpu_custom_call.1} parent=1 // pred_check_branch
      %77 = sbr.rel (0) target = $region29
    $region28: #{tpu_custom_call.1} parent=1 // pred_region
      %79 = dma.done [#allocation6], 256
    $region29: #{tpu_custom_call.1} parent=1 // pred_fallthru
      _
    // Predicated region
    $region30: #{tpu_custom_call.1} parent=1 // pred_check
      _
    $region31: #{tpu_custom_call.1} parent=1 // pred_check_branch
      %81 = sbr.rel (0) target = $region33
    $region32: #{tpu_custom_call.1} parent=1 // pred_region
      %83 = dma.done [#allocation9], 256
    $region33: #{tpu_custom_call.1} parent=1 // pred_fallthru
      _
    %p84 = scmp.eq.s32.totalorder 0, 0
    // Predicated region
    $region34: #{tpu_custom_call.1} parent=1 // pred_check
      %p85 = pneg %p84
    $region35: #{tpu_custom_call.1} parent=1 // pred_check_branch
      %87 = sbr.rel (%p85) target = $region37
    $region36: #{tpu_custom_call.1} parent=1 // pred_region
      %88 = vst [vmem:[#allocation11] sm:$0xff] 0.0
      %89 = vst [vmem:[#allocation11 + $0x8] sm:$0xff] 0.0
    $region37: #{tpu_custom_call.1} parent=1 // pred_fallthru
      _
    %v90 = vld [vmem:[#allocation11] sm:$0xff]
    %v91 = vld [vmem:[#allocation11 + $0x8] sm:$0xff]
    %v92 = vld [vmem:[#allocation2] sm:$0xf]
    %v93 = vld [vmem:[#allocation2 + $0x4] sm:$0xf]
    %v94 = vld [vmem:[#allocation5] sm:$0xf]
    %v95 = vld [vmem:[#allocation5 + $0x4] sm:$0xf]
    %v96 = vld [vmem:[#allocation5 + $0x8] sm:$0xf]
    %v97 = vld [vmem:[#allocation5 + $0xc] sm:$0xf]
    %v98 = vld [vmem:[#allocation5 + $0x10] sm:$0xf]
    %v99 = vld [vmem:[#allocation5 + $0x14] sm:$0xf]
    %v100 = vld [vmem:[#allocation5 + $0x18] sm:$0xf]
    %v101 = vld [vmem:[#allocation5 + $0x1c] sm:$0xf]
    %v102 = vld [vmem:[#allocation5 + $0x20] sm:$0xf]
    %v103 = vld [vmem:[#allocation5 + $0x24] sm:$0xf]
    %v104 = vld [vmem:[#allocation5 + $0x28] sm:$0xf]
    %v105 = vld [vmem:[#allocation5 + $0x2c] sm:$0xf]
    %v106 = vld [vmem:[#allocation5 + $0x30] sm:$0xf]
    %v107 = vld [vmem:[#allocation5 + $0x34] sm:$0xf]
    %v108 = vld [vmem:[#allocation5 + $0x38] sm:$0xf]
    %v109 = vld [vmem:[#allocation5 + $0x3c] sm:$0xf]
    %v112 = vunpack.c.l.b16 %v92
    %v113 = vunpack.c.l.b16 %v93
    %v114 = vpack.c.b16 %v113, %v112
    %v132 = vunpack.c.l.b16 %v94
    %v133 = vunpack.c.l.b16 %v95
    %v134 = vunpack.c.l.b16 %v96
    %v135 = vunpack.c.l.b16 %v97
    %v136 = vunpack.c.l.b16 %v98
    %v137 = vunpack.c.l.b16 %v99
    %v138 = vunpack.c.l.b16 %v100
    %v139 = vunpack.c.l.b16 %v101
    %v140 = vunpack.c.l.b16 %v102
    %v141 = vunpack.c.l.b16 %v103
    %v142 = vunpack.c.l.b16 %v104
    %v143 = vunpack.c.l.b16 %v105
    %v144 = vunpack.c.l.b16 %v106
    %v145 = vunpack.c.l.b16 %v107
    %v146 = vunpack.c.l.b16 %v108
    %v147 = vunpack.c.l.b16 %v109
    %v148 = vpack.c.b16 %v133, %v132
    %v149 = vpack.c.b16 %v135, %v134
    %v150 = vpack.c.b16 %v137, %v136
    %v151 = vpack.c.b16 %v139, %v138
    %v152 = vpack.c.b16 %v141, %v140
    %v153 = vpack.c.b16 %v143, %v142
    %v154 = vpack.c.b16 %v145, %v144
    %v155 = vpack.c.b16 %v147, %v146
    %164 = vmatpush.bf16.xpose.msra.mxu0 %v155
    %165 = vmatpush.bf16.xpose.msra.mxu0 %v154
    %166 = vmatpush.bf16.xpose.msra.mxu0 %v153
    %167 = vmatpush.bf16.xpose.msra.mxu0 %v152
    %168 = vmatpush.bf16.xpose.msra.mxu0 %v151
    %169 = vmatpush.bf16.xpose.msra.mxu0 %v150
    %170 = vmatpush.bf16.xpose.msra.mxu0 %v149
    %171 = vmatpush.bf16.xpose.msra.mxu0 %v148
    %172 = vmatmul.bf16.gmra.mxu0 %v114
    %v173 = vpop.f32.mrf.mxu0
    %v174 = vadd.f32 0.0, %v173
    %v175 = vpop.f32.mrf.mxu0
    %v176 = vadd.f32 0.0, %v175
    %177 = vdwg.mxu0
    %v178 = vadd.f32 %v90, %v174
    %v179 = vadd.f32 %v91, %v176
    %180 = vst [vmem:[#allocation11] sm:$0xff] %v178
    %181 = vst [vmem:[#allocation11 + $0x8] sm:$0xff] %v179
    // Predicated region
    $region38: #{tpu_custom_call.1} parent=1 // pred_check
      %p182 = pneg %p84
    $region39: #{tpu_custom_call.1} parent=1 // pred_check_branch
      %184 = sbr.rel (%p182) target = $region41
    $region40: #{tpu_custom_call.1} parent=1 // pred_region
      %v185 = vld [vmem:[#allocation11] sm:$0xff]
      %v186 = vld [vmem:[#allocation11 + $0x8] sm:$0xff]
      %v187 = vadd.f32 %v185, -0.5
      %v188 = vadd.f32 %v186, -0.5
      %v189 = vmax.f32 %v187, 0.0
      %v190 = vmax.f32 %v188, 0.0
      %191 = vst [vmem:[#allocation11] sm:$0xff] %v189
      %192 = vst [vmem:[#allocation11 + $0x8] sm:$0xff] %v190
      %v193 = vld [vmem:[#allocation7] sm:$0xff]
      %v194 = vld [vmem:[#allocation7 + $0x8] sm:$0xff]
      %v195 = vld [vmem:[#allocation8] sm:$0xff]
      %v196 = vld [vmem:[#allocation8 + $0x8] sm:$0xff]
      %vm197 = vcmp.lt.f32.partialorder %v195, %v189
      %vm198 = vcmp.lt.f32.partialorder %v196, %v190
      %v199 = vsel %vm197, 1, 0
      %v200 = vsel %vm198, 1, 0
      %v201 = vcvt.s32.f32 %v199
      %v202 = vcvt.s32.f32 %v200
      %v203 = vmul.f32 %v201, %v193
      %v204 = vmul.f32 %v202, %v194
      %205 = vst [vmem:[#allocation10] sm:$0xff] %v203
      %206 = vst [vmem:[#allocation10 + $0x8] sm:$0xff] %v204
    $region41: #{tpu_custom_call.1} parent=1 // pred_fallthru
      _
    // Predicated region
    $region42: #{tpu_custom_call.1} parent=1 // pred_check
      _
    $region43: #{tpu_custom_call.1} parent=1 // pred_check_branch
      %208 = sbr.rel (0) target = $region45
    $region44: #{tpu_custom_call.1} parent=1 // pred_region
      %210 = vsyncadd [#allocation4], 0
      %s211 = sshll.u32 [#allocation10], 4
      %s212 = int_to_ptr.vmem [resolvable:$true] %s211
      %s213 = sshll.u32 %s4, 4
      %s214 = int_to_ptr.hbm [resolvable:$true] %s213
      %219 = dma.vmem_to_hbm [thread:$0]  %s212, 256, %s214, [#allocation4], 128, 128, 8
    $region45: #{tpu_custom_call.1} parent=1 // pred_fallthru
      _
    // Predicated region
    $region46: #{tpu_custom_call.1} parent=1 // pred_check
      _
    $region47: #{tpu_custom_call.1} parent=1 // pred_check_branch
      %221 = sbr.rel (0) target = $region49
    $region48: #{tpu_custom_call.1} parent=1 // pred_region
      %223 = vsyncadd [#allocation12], 0
      %s224 = sshll.u32 [#allocation11], 4
      %s225 = int_to_ptr.vmem [resolvable:$true] %s224
      %s226 = sshll.u32 %s5, 4
      %s227 = int_to_ptr.hbm [resolvable:$true] %s226
      %232 = dma.vmem_to_hbm [thread:$0]  %s225, 256, %s227, [#allocation12], 128, 128, 8
    $region49: #{tpu_custom_call.1} parent=1 // pred_fallthru
      _
    // Predicated region
    $region50: #{tpu_custom_call.1} parent=1 // pred_check
      _
    $region51: #{tpu_custom_call.1} parent=1 // pred_check_branch
      %234 = sbr.rel (0) target = $region53
    $region52: #{tpu_custom_call.1} parent=1 // pred_region
      %236 = dma.done [#allocation4], 256
    $region53: #{tpu_custom_call.1} parent=1 // pred_fallthru
      _
    // Predicated region
    $region54: #{tpu_custom_call.1} parent=1 // pred_check
      _
    $region55: #{tpu_custom_call.1} parent=1 // pred_check_branch
      %238 = sbr.rel (0) target = $region57
    $region56: #{tpu_custom_call.1} parent=1 // pred_region
      %240 = dma.done [#allocation12], 256
    $region57: #{tpu_custom_call.1} parent=1 // pred_fallthru
      _
    %241 = vsyncpa [#allocation3], 1
    %242 = vsyncpa [#allocation6], 1
    %243 = vsyncpa [#allocation9], 1
    %244 = vsyncpa [#allocation4], 1
    %245 = vsyncpa [#allocation12], 1

</llo_original>
